<compile_context>
chip_gen: v6e
topology: v6e:2x2x1
jax: 0.10.0
libtpu: 0.0.40
codegen_flags: <defaults>
</compile_context>

<pallas_src>
import functools

import numpy as np
import jax
import jax.numpy as jnp
from jax import lax
from jax.experimental import pallas as pl
from jax.experimental.pallas import tpu as pltpu


def _round_up(a: int, b: int) -> int:
    return (a + b - 1) // b * b


def _snn_readout_kernel(x_ref, w_ref, out_ref, mem_sc, *, n_chunks, tt,
                        last_chunk_steps, n_out, alpha, approx_recip):
    """One (batch-tile, time-chunk) grid step, output-transposed layout.

    x_ref:   (tt, H, tb)   time-major x block (matmul dtype); x_ref[t] is a free (H, tb) view
    w_ref:   (O_p, H)      VMEM-resident W^T (zero-padded rows), matmul dtype
    out_ref: (O_p, tb)     resident f32 output block (sum of per-step softmaxes), transposed
    mem_sc:  (O_p, tb)     f32 scratch: leaky-integrator state carried across time chunks
    """
    c = pl.program_id(1)                 # time-chunk index (innermost, "arbitrary")
    o_p, tb = out_ref.shape

    @pl.when(c == 0)
    def _init():
        mem_sc[...] = jnp.zeros_like(mem_sc)
        out_ref[...] = jnp.zeros_like(out_ref)

    alpha_f = jnp.float32(alpha)
    beta_f = jnp.float32(1.0 - alpha)
    wv = w_ref[...]                      # no per-step cast: pre-cast in the wrapper

    # Additive bias masking zero-padded output rows out of the softmax (only if O % 8 != 0).
    # Hoisted out of the step loop; exp(-1e30 - m) == 0 so padded rows drop out of the sum too.
    if n_out != o_p:
        row_ids = lax.broadcasted_iota(jnp.int32, (o_p, tb), 0)
        pad_bias = jnp.where(row_ids < n_out, 0.0, -1e30).astype(jnp.float32)
    else:
        pad_bias = None

    def run_chunk(n_steps_in_chunk):
        mem = mem_sc[...]
        out = out_ref[...]
        # Short static unroll (time axis lives on the grid); all vector math stays f32
        # (v5e has no bf16 VPU/EUP path).
        for t in range(n_steps_in_chunk):
            h2_t = jnp.dot(wv, x_ref[t], preferred_element_type=jnp.float32)  # (O_p, tb)
            mem = alpha_f * mem + beta_f * h2_t
            z = mem if pad_bias is None else mem + pad_bias
            m = jnp.max(z, axis=0, keepdims=True)            # sublane reduce over O
            e = jnp.exp(z - m)
            denom = jnp.sum(e, axis=0, keepdims=True)
            out = out + e * pl.reciprocal(denom, approx=approx_recip)
        mem_sc[...] = mem
        out_ref[...] = out

    if last_chunk_steps == tt:
        run_chunk(tt)                                        # every chunk full: no guards at all
    else:
        if n_chunks > 1:
            @pl.when(c < n_chunks - 1)
            def _full():
                run_chunk(tt)                                # steady state: no validity selects

        @pl.when(c == n_chunks - 1)
        def _tail():
            run_chunk(last_chunk_steps)                      # statically shorter, still unmasked


def snn_readout_softmax(x, weight, *, tb=128, tt=None,
                        alpha=float(np.exp(-0.1)),
                        matmul_dtype=jnp.float32, approx_recip=False):
    """x: (B, T, H), weight: (H, O) -> (B, O) float32 (summed per-step softmax readout)."""
    x = jnp.asarray(x, jnp.float32)
    weight = jnp.asarray(weight, jnp.float32)
    B, T, H = x.shape
    Hw, O = weight.shape
    assert H == Hw and T >= 2
    n_steps = T - 1                        # PyTorch loop: for t in range(nb_steps - 1)

    assert tb % 128 == 0                   # batch rides the 128-lane axis
    o_p = _round_up(O, 8)                  # output rides sublanes

    # Generation-aware VMEM budget (v7x has 64 MiB physical; v5e/v6e have 128 MiB).
    try:
        vmem_cap = int(pltpu.get_tpu_info().vmem_capacity_bytes)
    except Exception:  # pragma: no cover - conservative fallback
        vmem_cap = 64 * 1024 * 1024
    vmem_limit = min(vmem_cap * 3 // 4, 96 * 1024 * 1024)

    x_bytes = jnp.dtype(matmul_dtype).itemsize
    if tt is None:
        # Double-buffered x window gets ~1/3 of the budget; bound the static unroll at 32 steps.
        per_step = 2 * H * tb * x_bytes
        tt = max(8, min(32, (vmem_limit // 3) // max(per_step, 1) // 8 * 8))
        tt = min(tt, _round_up(n_steps, 8))
    tt = max(1, int(tt))

    n_chunks = (n_steps + tt - 1) // tt
    last_chunk_steps = n_steps - (n_chunks - 1) * tt
    t_need = n_chunks * tt
    b_pad = _round_up(B, tb)

    # Time-major, batch-on-lanes layout: (B, T, H) -> (T, H, B), padded to (t_need, H, b_pad),
    # pre-cast once to the matmul dtype (no per-chunk casts inside the kernel).
    x_t = jnp.transpose(x, (1, 2, 0))
    if T > t_need:
        x_t = x_t[:t_need]
    elif T < t_need:
        x_t = jnp.pad(x_t, ((0, t_need - T), (0, 0), (0, 0)))
    if b_pad != B:
        x_t = jnp.pad(x_t, ((0, 0), (0, 0), (0, b_pad - B)))
    x_t = x_t.astype(matmul_dtype)

    # W^T, zero-padded to a multiple of 8 output rows, pre-cast once; stays VMEM-resident.
    w_t = weight.T
    if o_p != O:
        w_t = jnp.pad(w_t, ((0, o_p - O), (0, 0)))
    w_t = w_t.astype(matmul_dtype)

    kernel = functools.partial(
        _snn_readout_kernel, n_chunks=n_chunks, tt=tt,
        last_chunk_steps=last_chunk_steps, n_out=O, alpha=float(alpha),
        approx_recip=approx_recip)

    out_t = pl.pallas_call(
        kernel,
        out_shape=jax.ShapeDtypeStruct((o_p, b_pad), jnp.float32),
        grid_spec=pltpu.PrefetchScalarGridSpec(
            num_scalar_prefetch=0,
            grid=(b_pad // tb, n_chunks),
            in_specs=[
                pl.BlockSpec((tt, H, tb), lambda b, c: (c, 0, b)),   # streamed x chunks
                pl.BlockSpec((o_p, H), lambda b, c: (0, 0)),         # resident W^T
            ],
            out_specs=pl.BlockSpec((o_p, tb), lambda b, c: (0, b)),  # resident across time
            scratch_shapes=[pltpu.VMEM((o_p, tb), jnp.float32)],     # leaky-integrator state
        ),
        compiler_params=pltpu.CompilerParams(
            dimension_semantics=("parallel", "arbitrary"),
            vmem_limit_bytes=int(vmem_limit),
        ),
    )(x_t, w_t)

    # TODO(synk): the PyTorch module also appends every per-step softmax to the Python-side
    # `softmax_value_rec` recording list; only the summed readout is returned here.
    return out_t[:O, :B].T


def _reference(x, weight):
    """Pure-JAX mirror of the PyTorch forward."""
    B, T, _ = x.shape
    O = weight.shape[1]
    h2 = jnp.einsum('abc,cd->abd', x, weight)
    alpha = float(np.exp(-0.1))
    mem = jnp.zeros((B, O), jnp.float32)
    out = jnp.zeros((B, O), jnp.float32)
    for t in range(T - 1):
        mem = alpha * mem + (1 - alpha) * h2[:, t, :]
        out = out + jax.nn.softmax(mem, axis=1)
    return out


if __name__ == "__main__":
    # Small shapes consistent with the module: (batch, nb_steps, nb_hidden) and (nb_hidden, nb_outputs).
    batch, nb_steps, nb_hidden, nb_outputs = 2, 8, 32, 16

    key = jax.random.PRNGKey(0)
    kx, kw = jax.random.split(key)
    x = jax.random.normal(kx, (batch, nb_steps, nb_hidden), dtype=jnp.float32)

    # Deterministic xavier_uniform for weight_end: U(-a, a), a = sqrt(6/(fan_in+fan_out)).
    bound = float(np.sqrt(6.0 / (nb_hidden + nb_outputs)))
    weight_end = jax.random.uniform(kw, (nb_hidden, nb_outputs), jnp.float32,
                                    minval=-bound, maxval=bound)

    ref = _reference(x, weight_end)

    # Default (accurate) path: f32 MXU operands + exact reciprocal.
    out_exact = jax.block_until_ready(snn_readout_softmax(x, weight_end))
    np.testing.assert_allclose(np.asarray(out_exact), np.asarray(ref), rtol=2e-3, atol=2e-3)

    # Fast path: bf16 MXU operands (pre-cast in wrapper) + EUP approx reciprocal.
    out_fast = jax.block_until_ready(
        snn_readout_softmax(x, weight_end, matmul_dtype=jnp.bfloat16, approx_recip=True))
    np.testing.assert_allclose(np.asarray(out_fast), np.asarray(ref), rtol=2e-2, atol=2e-2)

    # Exercise multi-chunk accumulation, a partial tail chunk, and O % 8 != 0 sublane padding.
    batch2, T2, H2, O2 = 3, 20, 24, 10
    k2x, k2w = jax.random.split(jax.random.PRNGKey(1))
    x2 = jax.random.normal(k2x, (batch2, T2, H2), dtype=jnp.float32)
    w2 = jax.random.uniform(k2w, (H2, O2), jnp.float32, minval=-0.3, maxval=0.3)
    ref2 = _reference(x2, w2)
    out2 = jax.block_until_ready(snn_readout_softmax(x2, w2, tt=8))
    np.testing.assert_allclose(np.asarray(out2), np.asarray(ref2), rtol=2e-3, atol=2e-3)

    print("KERNEL_OK")
</pallas_src>

<mosaic_0001>
module attributes {stable_mosaic.version = 11 : i64} {
  func.func @_snn_readout_kernel(%arg0: i32, %arg1: i32, %arg2: memref<8x32x128xf32, #tpu.memory_space<vmem>>, %arg3: memref<16x32xf32, #tpu.memory_space<vmem>>, %arg4: memref<16x128xf32, #tpu.memory_space<vmem>>, %arg5: memref<16x128xf32, #tpu.memory_space<vmem>>) attributes {dimension_semantics = [#tpu.dimension_semantics<parallel>, #tpu.dimension_semantics<arbitrary>], iteration_bounds = array<i64: 1, 1>, scalar_prefetch = 0 : i64, scratch_operands = 1 : i64, tpu.core_type = #tpu.core_type<tc>, window_params = [{transform_indices = @transform_0, window_bounds = array<i64: 8, 32, 128>}, {pipeline_mode = #tpu.pipeline_mode<synchronous>, transform_indices = @transform_1, window_bounds = array<i64: 16, 32>}, {transform_indices = @transform_2, window_bounds = array<i64: 16, 128>}]} {
    %c0_i32 = arith.constant 0 : i32
    %0 = arith.cmpi eq, %arg1, %c0_i32 : i32
    %1 = arith.extui %0 : i1 to i32
    %c0_i32_0 = arith.constant 0 : i32
    %2 = arith.cmpi ne, %1, %c0_i32_0 : i32
    scf.if %2 {
      %cst_5 = arith.constant 0.000000e+00 : f32
      %7 = vector.broadcast %cst_5 : f32 to vector<16x128xf32>
      %c0_6 = arith.constant 0 : index
      %c0_7 = arith.constant 0 : index
      %8 = vector.load %arg5[%c0_6, %c0_7] : memref<16x128xf32, #tpu.memory_space<vmem>>, vector<16x128xf32>
      tpu.vector_store %arg5[%c0_6, %c0_7], %7 {strides = array<i32>} : memref<16x128xf32, #tpu.memory_space<vmem>>, vector<16x128xf32>,
      %cst_8 = arith.constant 0.000000e+00 : f32
      %9 = vector.broadcast %cst_8 : f32 to vector<16x128xf32>
      %c0_9 = arith.constant 0 : index
      %c0_10 = arith.constant 0 : index
      %10 = vector.load %arg4[%c0_9, %c0_10] : memref<16x128xf32, #tpu.memory_space<vmem>>, vector<16x128xf32>
      tpu.vector_store %arg4[%c0_9, %c0_10], %9 {strides = array<i32>} : memref<16x128xf32, #tpu.memory_space<vmem>>, vector<16x128xf32>,
    } else {
    }
    %c0 = arith.constant 0 : index
    %c0_1 = arith.constant 0 : index
    %3 = vector.load %arg3[%c0, %c0_1] : memref<16x32xf32, #tpu.memory_space<vmem>>, vector<16x32xf32>
    %c0_i32_2 = arith.constant 0 : i32
    %4 = arith.cmpi eq, %arg1, %c0_i32_2 : i32
    %5 = arith.extui %4 : i1 to i32
    %cst = arith.constant 0.904837429 : f32
    %cst_3 = arith.constant 0.0951625854 : f32
    %c0_i32_4 = arith.constant 0 : i32
    %6 = arith.cmpi ne, %5, %c0_i32_4 : i32
    scf.if %6 {
      %c0_5 = arith.constant 0 : index
      %c0_6 = arith.constant 0 : index
      %7 = vector.load %arg5[%c0_5, %c0_6] : memref<16x128xf32, #tpu.memory_space<vmem>>, vector<16x128xf32>
      %c0_7 = arith.constant 0 : index
      %c0_8 = arith.constant 0 : index
      %8 = vector.load %arg4[%c0_7, %c0_8] : memref<16x128xf32, #tpu.memory_space<vmem>>, vector<16x128xf32>
      %c0_9 = arith.constant 0 : index
      %c0_10 = arith.constant 0 : index
      %c0_11 = arith.constant 0 : index
      %9 = vector.load %arg2[%c0_9, %c0_10, %c0_11] : memref<8x32x128xf32, #tpu.memory_space<vmem>>, vector<1x32x128xf32>
      %10 = vector.shape_cast %9 : vector<1x32x128xf32> to vector<32x128xf32>
      %cst_12 = arith.constant dense<0.000000e+00> : vector<16x128xf32>
      %11 = tpu.matmul %3, %10, %cst_12 {dimension_numbers = #tpu.dot_dimension_numbers<[1], [0], [0], [1], [0, 0, 1, 1], [], []>} : vector<16x32xf32>, vector<32x128xf32>, vector<16x128xf32> -> vector<16x128xf32>
      %12 = vector.broadcast %cst : f32 to vector<16x128xf32>
      %13 = arith.mulf %12, %7 : vector<16x128xf32>
      %14 = vector.broadcast %cst_3 : f32 to vector<16x128xf32>
      %15 = arith.mulf %14, %11 : vector<16x128xf32>
      %16 = arith.addf %13, %15 : vector<16x128xf32>
      %cst_13 = arith.constant dense<0xFF800000> : vector<128xf32>
      %17 = vector.multi_reduction <maximumf>, %16, %cst_13 [0] : vector<16x128xf32> to vector<128xf32>
      %18 = vector.shape_cast %17 : vector<128xf32> to vector<1x128xf32>
      %19 = vector.broadcast %18 : vector<1x128xf32> to vector<16x128xf32>
      %20 = arith.subf %16, %19 : vector<16x128xf32>
      %21 = math.exp %20 : vector<16x128xf32>
      %cst_14 = arith.constant dense<0.000000e+00> : vector<128xf32>
      %22 = vector.multi_reduction <add>, %21, %cst_14 [0] : vector<16x128xf32> to vector<128xf32>
      %23 = vector.shape_cast %22 : vector<128xf32> to vector<1x128xf32>
      %24 = tpu.reciprocal %23 : vector<1x128xf32> -> vector<1x128xf32>
      %25 = vector.broadcast %24 : vector<1x128xf32> to vector<16x128xf32>
      %26 = arith.mulf %21, %25 : vector<16x128xf32>
      %27 = arith.addf %8, %26 : vector<16x128xf32>
      %c1 = arith.constant 1 : index
      %c0_15 = arith.constant 0 : index
      %c0_16 = arith.constant 0 : index
      %28 = vector.load %arg2[%c1, %c0_15, %c0_16] : memref<8x32x128xf32, #tpu.memory_space<vmem>>, vector<1x32x128xf32>
      %29 = vector.shape_cast %28 : vector<1x32x128xf32> to vector<32x128xf32>
      %cst_17 = arith.constant dense<0.000000e+00> : vector<16x128xf32>
      %30 = tpu.matmul %3, %29, %cst_17 {dimension_numbers = #tpu.dot_dimension_numbers<[1], [0], [0], [1], [0, 0, 1, 1], [], []>} : vector<16x32xf32>, vector<32x128xf32>, vector<16x128xf32> -> vector<16x128xf32>
      %31 = vector.broadcast %cst : f32 to vector<16x128xf32>
      %32 = arith.mulf %31, %16 : vector<16x128xf32>
      %33 = vector.broadcast %cst_3 : f32 to vector<16x128xf32>
      %34 = arith.mulf %33, %30 : vector<16x128xf32>
      %35 = arith.addf %32, %34 : vector<16x128xf32>
      %cst_18 = arith.constant dense<0xFF800000> : vector<128xf32>
      %36 = vector.multi_reduction <maximumf>, %35, %cst_18 [0] : vector<16x128xf32> to vector<128xf32>
      %37 = vector.shape_cast %36 : vector<128xf32> to vector<1x128xf32>
      %38 = vector.broadcast %37 : vector<1x128xf32> to vector<16x128xf32>
      %39 = arith.subf %35, %38 : vector<16x128xf32>
      %40 = math.exp %39 : vector<16x128xf32>
      %cst_19 = arith.constant dense<0.000000e+00> : vector<128xf32>
      %41 = vector.multi_reduction <add>, %40, %cst_19 [0] : vector<16x128xf32> to vector<128xf32>
      %42 = vector.shape_cast %41 : vector<128xf32> to vector<1x128xf32>
      %43 = tpu.reciprocal %42 : vector<1x128xf32> -> vector<1x128xf32>
      %44 = vector.broadcast %43 : vector<1x128xf32> to vector<16x128xf32>
      %45 = arith.mulf %40, %44 : vector<16x128xf32>
      %46 = arith.addf %27, %45 : vector<16x128xf32>
      %c2 = arith.constant 2 : index
      %c0_20 = arith.constant 0 : index
      %c0_21 = arith.constant 0 : index
      %47 = vector.load %arg2[%c2, %c0_20, %c0_21] : memref<8x32x128xf32, #tpu.memory_space<vmem>>, vector<1x32x128xf32>
      %48 = vector.shape_cast %47 : vector<1x32x128xf32> to vector<32x128xf32>
      %cst_22 = arith.constant dense<0.000000e+00> : vector<16x128xf32>
      %49 = tpu.matmul %3, %48, %cst_22 {dimension_numbers = #tpu.dot_dimension_numbers<[1], [0], [0], [1], [0, 0, 1, 1], [], []>} : vector<16x32xf32>, vector<32x128xf32>, vector<16x128xf32> -> vector<16x128xf32>
      %50 = vector.broadcast %cst : f32 to vector<16x128xf32>
      %51 = arith.mulf %50, %35 : vector<16x128xf32>
      %52 = vector.broadcast %cst_3 : f32 to vector<16x128xf32>
      %53 = arith.mulf %52, %49 : vector<16x128xf32>
      %54 = arith.addf %51, %53 : vector<16x128xf32>
      %cst_23 = arith.constant dense<0xFF800000> : vector<128xf32>
      %55 = vector.multi_reduction <maximumf>, %54, %cst_23 [0] : vector<16x128xf32> to vector<128xf32>
      %56 = vector.shape_cast %55 : vector<128xf32> to vector<1x128xf32>
      %57 = vector.broadcast %56 : vector<1x128xf32> to vector<16x128xf32>
      %58 = arith.subf %54, %57 : vector<16x128xf32>
      %59 = math.exp %58 : vector<16x128xf32>
      %cst_24 = arith.constant dense<0.000000e+00> : vector<128xf32>
      %60 = vector.multi_reduction <add>, %59, %cst_24 [0] : vector<16x128xf32> to vector<128xf32>
      %61 = vector.shape_cast %60 : vector<128xf32> to vector<1x128xf32>
      %62 = tpu.reciprocal %61 : vector<1x128xf32> -> vector<1x128xf32>
      %63 = vector.broadcast %62 : vector<1x128xf32> to vector<16x128xf32>
      %64 = arith.mulf %59, %63 : vector<16x128xf32>
      %65 = arith.addf %46, %64 : vector<16x128xf32>
      %c3 = arith.constant 3 : index
      %c0_25 = arith.constant 0 : index
      %c0_26 = arith.constant 0 : index
      %66 = vector.load %arg2[%c3, %c0_25, %c0_26] : memref<8x32x128xf32, #tpu.memory_space<vmem>>, vector<1x32x128xf32>
      %67 = vector.shape_cast %66 : vector<1x32x128xf32> to vector<32x128xf32>
      %cst_27 = arith.constant dense<0.000000e+00> : vector<16x128xf32>
      %68 = tpu.matmul %3, %67, %cst_27 {dimension_numbers = #tpu.dot_dimension_numbers<[1], [0], [0], [1], [0, 0, 1, 1], [], []>} : vector<16x32xf32>, vector<32x128xf32>, vector<16x128xf32> -> vector<16x128xf32>
      %69 = vector.broadcast %cst : f32 to vector<16x128xf32>
      %70 = arith.mulf %69, %54 : vector<16x128xf32>
      %71 = vector.broadcast %cst_3 : f32 to vector<16x128xf32>
      %72 = arith.mulf %71, %68 : vector<16x128xf32>
      %73 = arith.addf %70, %72 : vector<16x128xf32>
      %cst_28 = arith.constant dense<0xFF800000> : vector<128xf32>
      %74 = vector.multi_reduction <maximumf>, %73, %cst_28 [0] : vector<16x128xf32> to vector<128xf32>
      %75 = vector.shape_cast %74 : vector<128xf32> to vector<1x128xf32>
      %76 = vector.broadcast %75 : vector<1x128xf32> to vector<16x128xf32>
      %77 = arith.subf %73, %76 : vector<16x128xf32>
      %78 = math.exp %77 : vector<16x128xf32>
      %cst_29 = arith.constant dense<0.000000e+00> : vector<128xf32>
      %79 = vector.multi_reduction <add>, %78, %cst_29 [0] : vector<16x128xf32> to vector<128xf32>
      %80 = vector.shape_cast %79 : vector<128xf32> to vector<1x128xf32>
      %81 = tpu.reciprocal %80 : vector<1x128xf32> -> vector<1x128xf32>
      %82 = vector.broadcast %81 : vector<1x128xf32> to vector<16x128xf32>
      %83 = arith.mulf %78, %82 : vector<16x128xf32>
      %84 = arith.addf %65, %83 : vector<16x128xf32>
      %c4 = arith.constant 4 : index
      %c0_30 = arith.constant 0 : index
      %c0_31 = arith.constant 0 : index
      %85 = vector.load %arg2[%c4, %c0_30, %c0_31] : memref<8x32x128xf32, #tpu.memory_space<vmem>>, vector<1x32x128xf32>
      %86 = vector.shape_cast %85 : vector<1x32x128xf32> to vector<32x128xf32>
      %cst_32 = arith.constant dense<0.000000e+00> : vector<16x128xf32>
      %87 = tpu.matmul %3, %86, %cst_32 {dimension_numbers = #tpu.dot_dimension_numbers<[1], [0], [0], [1], [0, 0, 1, 1], [], []>} : vector<16x32xf32>, vector<32x128xf32>, vector<16x128xf32> -> vector<16x128xf32>
      %88 = vector.broadcast %cst : f32 to vector<16x128xf32>
      %89 = arith.mulf %88, %73 : vector<16x128xf32>
      %90 = vector.broadcast %cst_3 : f32 to vector<16x128xf32>
      %91 = arith.mulf %90, %87 : vector<16x128xf32>
      %92 = arith.addf %89, %91 : vector<16x128xf32>
      %cst_33 = arith.constant dense<0xFF800000> : vector<128xf32>
      %93 = vector.multi_reduction <maximumf>, %92, %cst_33 [0] : vector<16x128xf32> to vector<128xf32>
      %94 = vector.shape_cast %93 : vector<128xf32> to vector<1x128xf32>
      %95 = vector.broadcast %94 : vector<1x128xf32> to vector<16x128xf32>
      %96 = arith.subf %92, %95 : vector<16x128xf32>
      %97 = math.exp %96 : vector<16x128xf32>
      %cst_34 = arith.constant dense<0.000000e+00> : vector<128xf32>
      %98 = vector.multi_reduction <add>, %97, %cst_34 [0] : vector<16x128xf32> to vector<128xf32>
      %99 = vector.shape_cast %98 : vector<128xf32> to vector<1x128xf32>
      %100 = tpu.reciprocal %99 : vector<1x128xf32> -> vector<1x128xf32>
      %101 = vector.broadcast %100 : vector<1x128xf32> to vector<16x128xf32>
      %102 = arith.mulf %97, %101 : vector<16x128xf32>
      %103 = arith.addf %84, %102 : vector<16x128xf32>
      %c5 = arith.constant 5 : index
      %c0_35 = arith.constant 0 : index
      %c0_36 = arith.constant 0 : index
      %104 = vector.load %arg2[%c5, %c0_35, %c0_36] : memref<8x32x128xf32, #tpu.memory_space<vmem>>, vector<1x32x128xf32>
      %105 = vector.shape_cast %104 : vector<1x32x128xf32> to vector<32x128xf32>
      %cst_37 = arith.constant dense<0.000000e+00> : vector<16x128xf32>
      %106 = tpu.matmul %3, %105, %cst_37 {dimension_numbers = #tpu.dot_dimension_numbers<[1], [0], [0], [1], [0, 0, 1, 1], [], []>} : vector<16x32xf32>, vector<32x128xf32>, vector<16x128xf32> -> vector<16x128xf32>
      %107 = vector.broadcast %cst : f32 to vector<16x128xf32>
      %108 = arith.mulf %107, %92 : vector<16x128xf32>
      %109 = vector.broadcast %cst_3 : f32 to vector<16x128xf32>
      %110 = arith.mulf %109, %106 : vector<16x128xf32>
      %111 = arith.addf %108, %110 : vector<16x128xf32>
      %cst_38 = arith.constant dense<0xFF800000> : vector<128xf32>
      %112 = vector.multi_reduction <maximumf>, %111, %cst_38 [0] : vector<16x128xf32> to vector<128xf32>
      %113 = vector.shape_cast %112 : vector<128xf32> to vector<1x128xf32>
      %114 = vector.broadcast %113 : vector<1x128xf32> to vector<16x128xf32>
      %115 = arith.subf %111, %114 : vector<16x128xf32>
      %116 = math.exp %115 : vector<16x128xf32>
      %cst_39 = arith.constant dense<0.000000e+00> : vector<128xf32>
      %117 = vector.multi_reduction <add>, %116, %cst_39 [0] : vector<16x128xf32> to vector<128xf32>
      %118 = vector.shape_cast %117 : vector<128xf32> to vector<1x128xf32>
      %119 = tpu.reciprocal %118 : vector<1x128xf32> -> vector<1x128xf32>
      %120 = vector.broadcast %119 : vector<1x128xf32> to vector<16x128xf32>
      %121 = arith.mulf %116, %120 : vector<16x128xf32>
      %122 = arith.addf %103, %121 : vector<16x128xf32>
      %c6 = arith.constant 6 : index
      %c0_40 = arith.constant 0 : index
      %c0_41 = arith.constant 0 : index
      %123 = vector.load %arg2[%c6, %c0_40, %c0_41] : memref<8x32x128xf32, #tpu.memory_space<vmem>>, vector<1x32x128xf32>
      %124 = vector.shape_cast %123 : vector<1x32x128xf32> to vector<32x128xf32>
      %cst_42 = arith.constant dense<0.000000e+00> : vector<16x128xf32>
      %125 = tpu.matmul %3, %124, %cst_42 {dimension_numbers = #tpu.dot_dimension_numbers<[1], [0], [0], [1], [0, 0, 1, 1], [], []>} : vector<16x32xf32>, vector<32x128xf32>, vector<16x128xf32> -> vector<16x128xf32>
      %126 = vector.broadcast %cst : f32 to vector<16x128xf32>
      %127 = arith.mulf %126, %111 : vector<16x128xf32>
      %128 = vector.broadcast %cst_3 : f32 to vector<16x128xf32>
      %129 = arith.mulf %128, %125 : vector<16x128xf32>
      %130 = arith.addf %127, %129 : vector<16x128xf32>
      %cst_43 = arith.constant dense<0xFF800000> : vector<128xf32>
      %131 = vector.multi_reduction <maximumf>, %130, %cst_43 [0] : vector<16x128xf32> to vector<128xf32>
      %132 = vector.shape_cast %131 : vector<128xf32> to vector<1x128xf32>
      %133 = vector.broadcast %132 : vector<1x128xf32> to vector<16x128xf32>
      %134 = arith.subf %130, %133 : vector<16x128xf32>
      %135 = math.exp %134 : vector<16x128xf32>
      %cst_44 = arith.constant dense<0.000000e+00> : vector<128xf32>
      %136 = vector.multi_reduction <add>, %135, %cst_44 [0] : vector<16x128xf32> to vector<128xf32>
      %137 = vector.shape_cast %136 : vector<128xf32> to vector<1x128xf32>
      %138 = tpu.reciprocal %137 : vector<1x128xf32> -> vector<1x128xf32>
      %139 = vector.broadcast %138 : vector<1x128xf32> to vector<16x128xf32>
      %140 = arith.mulf %135, %139 : vector<16x128xf32>
      %141 = arith.addf %122, %140 : vector<16x128xf32>
      %c0_45 = arith.constant 0 : index
      %c0_46 = arith.constant 0 : index
      %142 = vector.load %arg5[%c0_45, %c0_46] : memref<16x128xf32, #tpu.memory_space<vmem>>, vector<16x128xf32>
      tpu.vector_store %arg5[%c0_45, %c0_46], %130 {strides = array<i32>} : memref<16x128xf32, #tpu.memory_space<vmem>>, vector<16x128xf32>,
      %c0_47 = arith.constant 0 : index
      %c0_48 = arith.constant 0 : index
      %143 = vector.load %arg4[%c0_47, %c0_48] : memref<16x128xf32, #tpu.memory_space<vmem>>, vector<16x128xf32>
      tpu.vector_store %arg4[%c0_47, %c0_48], %141 {strides = array<i32>} : memref<16x128xf32, #tpu.memory_space<vmem>>, vector<16x128xf32>,
    } else {
    }
    return
  }
  func.func @transform_0(%arg0: i32, %arg1: i32) -> (i32, i32, i32) {
    %c0_i32 = arith.constant 0 : i32
    %c0_i32_0 = arith.constant 0 : i32
    return %arg1, %c0_i32, %arg0 : i32, i32, i32
  }
  func.func @transform_1(%arg0: i32, %arg1: i32) -> (i32, i32) {
    %c0_i32 = arith.constant 0 : i32
    %c0_i32_0 = arith.constant 0 : i32
    %c0_i32_1 = arith.constant 0 : i32
    return %c0_i32, %c0_i32_0 : i32, i32
  }
  func.func @transform_2(%arg0: i32, %arg1: i32) -> (i32, i32) {
    %c0_i32 = arith.constant 0 : i32
    %c0_i32_0 = arith.constant 0 : i32
    return %c0_i32, %arg0 : i32, i32
  }
}

</mosaic_0001>

<llo_original>
// kernel: tpu_custom_call.1
$region0: #{tpu_custom_call.1}
  #allocation0 [shape = 'u32[]', space=smem, size = 0x4, offset = 0x4, fixed_abs, tag = 'smem constant byte address 0x4 - core index']
  #allocation1 [shape = 'u32[144,128]{1,0:T(1,128)}', space=vmem, size = 0x12000, scoped, tag = 'internal scratch']
  #allocation2 [shape = 'f32[16,128]{1,0:T(8,128)}', space=vmem, size = 0x2000, scoped, tag = 'scratch operand']
  %s0 = inlined_call_operand.hbm [shape: f32[8,32,128], index: 0, kind: input, shape index: {}]
  %s1 = inlined_call_operand.hbm [shape: f32[16,32], index: 1, kind: input, shape index: {}]
  %s2 = inlined_call_operand.hbm [shape: f32[16,128], index: 2, kind: output, shape index: {}]
  %s3 = sld [smem:[#allocation0]]
  $region34: #{tpu_custom_call.1} parent=0
    _
  %s5 = ssub.s32 1, %s3
  %s6 = scalar_select 0, %s5, %s3
  $region1: #{tpu_custom_call.1} parent=0
    #allocation3 [shape = 'u8[131072]{0}', space=vmem, size = 0x20000, scoped, tag = 'input window, operand 0, single buffered']
    #allocation4 [shape = 's32[1]{0}', space=sflag, size = 0x4, scoped, tag = 'scoped memory for tpu_custom_call.1']
    #allocation5 [shape = 's32[1]{0}', space=sflag, size = 0x4, scoped, tag = 'scoped memory for tpu_custom_call.1']
    #allocation6 [shape = 'u8[8192]{0}', space=vmem, size = 0x2000, scoped, tag = 'input window, operand 1, single buffered']
    #allocation7 [shape = 's32[1]{0}', space=sflag, size = 0x4, scoped, tag = 'scoped memory for tpu_custom_call.1']
    #allocation8 [shape = 'u8[8192]{0}', space=vmem, size = 0x2000, scoped, tag = 'output window, operand 0, single buffered']
    %7 = vsyncpa [#allocation4], 0
    %8 = vsyncpa [#allocation7], 0
    %9 = vsyncpa [#allocation5], 0
    // Predicated region
    $region2: #{tpu_custom_call.1} parent=1 // pred_check
      _
    $region3: #{tpu_custom_call.1} parent=1 // pred_check_branch
      %11 = sbr.rel (0) target = $region5
    $region4: #{tpu_custom_call.1} parent=1 // pred_region
      %s13 = ssub.s32 4096, 4096
      %14 = vsyncadd [#allocation4], %s13
      %s15 = sshll.u32 [#allocation3], 4
      %s16 = int_to_ptr.vmem [resolvable:$true] %s15
      %21 = dma.hbm_to_vmem [thread:$0]  %s0, 4096, %s16, [#allocation4], 128, 128, 8
    $region5: #{tpu_custom_call.1} parent=1 // pred_fallthru
      _
    // Predicated region
    $region6: #{tpu_custom_call.1} parent=1 // pred_check
      _
    $region7: #{tpu_custom_call.1} parent=1 // pred_check_branch
      %23 = sbr.rel (0) target = $region9
    $region8: #{tpu_custom_call.1} parent=1 // pred_region
      %s25 = ssub.s32 256, 256
      %26 = vsyncadd [#allocation7], %s25
      %s27 = sshll.u32 [#allocation6], 4
      %s28 = int_to_ptr.vmem [resolvable:$true] %s27
      %33 = dma.hbm_to_vmem [thread:$0]  %s1, 256, %s28, [#allocation7], 128, 128, 8
    $region9: #{tpu_custom_call.1} parent=1 // pred_fallthru
      _
    // Predicated region
    $region10: #{tpu_custom_call.1} parent=1 // pred_check
      _
    $region11: #{tpu_custom_call.1} parent=1 // pred_check_branch
      %35 = sbr.rel (0) target = $region13
    $region12: #{tpu_custom_call.1} parent=1 // pred_region
      %36 = dma.done [#allocation4], 4096
    $region13: #{tpu_custom_call.1} parent=1 // pred_fallthru
      _
    // Predicated region
    $region14: #{tpu_custom_call.1} parent=1 // pred_check
      _
    $region15: #{tpu_custom_call.1} parent=1 // pred_check_branch
      %38 = sbr.rel (0) target = $region17
    $region16: #{tpu_custom_call.1} parent=1 // pred_region
      %39 = dma.done [#allocation7], 256
    $region17: #{tpu_custom_call.1} parent=1 // pred_fallthru
      _
    %p40 = scmp.eq.s32.totalorder 0, 0
    // Predicated region
    $region18: #{tpu_custom_call.1} parent=1 // pred_check
      %p41 = pneg %p40
    $region19: #{tpu_custom_call.1} parent=1 // pred_check_branch
      %43 = sbr.rel (%p41) target = $region21
    $region20: #{tpu_custom_call.1} parent=1 // pred_region
      %44 = vst [vmem:[#allocation2] sm:$0xff] 0.0
      %45 = vst [vmem:[#allocation2 + $0x8] sm:$0xff] 0.0
      %46 = vst [vmem:[#allocation8] sm:$0xff] 0.0
      %47 = vst [vmem:[#allocation8 + $0x8] sm:$0xff] 0.0
    $region21: #{tpu_custom_call.1} parent=1 // pred_fallthru
      _
    %v48 = vld [vmem:[#allocation6] sm:$0xff]
    %v49 = vld [vmem:[#allocation6 + $0x8] sm:$0xff]
    // Predicated region
    $region22: #{tpu_custom_call.1} parent=1 // pred_check
      %p50 = pneg %p40
    $region23: #{tpu_custom_call.1} parent=1 // pred_check_branch
      %52 = sbr.rel (%p50) target = $region25
    $region24: #{tpu_custom_call.1} parent=1 // pred_region
      %v53 = vld [vmem:[#allocation2] sm:$0xff]
      %v54 = vld [vmem:[#allocation2 + $0x8] sm:$0xff]
      %v55 = vld [vmem:[#allocation8] sm:$0xff]
      %v56 = vld [vmem:[#allocation8 + $0x8] sm:$0xff]
      %v57 = vld [vmem:[#allocation3] sm:$0xff]
      %v58 = vld [vmem:[#allocation3 + $0x8] sm:$0xff]
      %v59 = vld [vmem:[#allocation3 + $0x10] sm:$0xff]
      %v60 = vld [vmem:[#allocation3 + $0x18] sm:$0xff]
      %vm61 = vcmask 261120
      %v63 = vsel %vm61, %v48, 0
      %v66 = vsel %vm61, %v49, 0
      %68 = vmatprep.subr.mxu0 0.0
      %69 = vmatpush1.msra.mxu0 0.0
      %70 = vmatprep.subr.mxu0 0.0
      %71 = vmatpush1.msra.mxu0 0.0
      %72 = vmatprep.subr.mxu0 0.0
      %73 = vmatpush1.msra.mxu0 0.0
      %74 = vmatprep.subr.mxu0 0.0
      %75 = vmatpush1.msra.mxu0 0.0
      %76 = vmatprep.subr.mxu0 0.0
      %77 = vmatpush1.msra.mxu0 0.0
      %78 = vmatprep.subr.mxu0 0.0
      %79 = vmatpush1.msra.mxu0 0.0
      %80 = vmatprep.subr.mxu0 0.0
      %81 = vmatpush1.msra.mxu0 0.0
      %82 = vmatprep.subr.mxu0 0.0
      %83 = vmatpush1.msra.mxu0 0.0
      %84 = vmatprep.subr.mxu0 0.0
      %85 = vmatpush1.msra.mxu0 0.0
      %86 = vmatprep.subr.mxu0 0.0
      %87 = vmatpush1.msra.mxu0 0.0
      %88 = vmatprep.subr.mxu0 0.0
      %89 = vmatpush1.msra.mxu0 0.0
      %90 = vmatprep.subr.mxu0 0.0
      %91 = vmatpush1.msra.mxu0 0.0
      %92 = vmatprep.subr.mxu0 0.0
      %93 = vmatpush1.msra.mxu0 %v60
      %94 = vmatprep.subr.mxu0 0.0
      %95 = vmatpush1.msra.mxu0 %v59
      %96 = vmatprep.subr.mxu0 0.0
      %97 = vmatpush1.msra.mxu0 %v58
      %98 = vmatprep.subr.mxu0 0.0
      %99 = vmatpush1.msra.mxu0 %v57
      %100 = vmatprep.subr.mxu0 0.0
      %101 = vmatpush2.msra.mxu0 0.0
      %102 = vmatprep.subr.mxu0 0.0
      %103 = vmatpush2.msra.mxu0 0.0
      %104 = vmatprep.subr.mxu0 0.0
      %105 = vmatpush2.msra.mxu0 0.0
      %106 = vmatprep.subr.mxu0 0.0
      %107 = vmatpush2.msra.mxu0 0.0
      %108 = vmatprep.subr.mxu0 0.0
      %109 = vmatpush2.msra.mxu0 0.0
      %110 = vmatprep.subr.mxu0 0.0
      %111 = vmatpush2.msra.mxu0 0.0
      %112 = vmatprep.subr.mxu0 0.0
      %113 = vmatpush2.msra.mxu0 0.0
      %114 = vmatprep.subr.mxu0 0.0
      %115 = vmatpush2.msra.mxu0 0.0
      %116 = vmatprep.subr.mxu0 0.0
      %117 = vmatpush2.msra.mxu0 0.0
      %118 = vmatprep.subr.mxu0 0.0
      %119 = vmatpush2.msra.mxu0 0.0
      %120 = vmatprep.subr.mxu0 0.0
      %121 = vmatpush2.msra.mxu0 0.0
      %122 = vmatprep.subr.mxu0 0.0
      %123 = vmatpush2.msra.mxu0 0.0
      %124 = vmatprep.subr.mxu0 0.0
      %125 = vmatpush2.msra.mxu0 0.0
      %126 = vmatprep.subr.mxu0 0.0
      %127 = vmatpush2.msra.mxu0 0.0
      %128 = vmatprep.subr.mxu0 0.0
      %129 = vmatpush2.msra.mxu0 0.0
      %130 = vmatprep.subr.mxu0 0.0
      %131 = vmatpush2.msra.mxu0 0.0
      %132 = vmatprep.mubr.f32.mxu0 0.0
      %133 = vmatmul.mubr.f32.gmra.mxu0 %v63
      %v134 = vpop.f32.mrf.mxu0
      %v135 = vadd.f32 0.0, %v134
      %v136 = vpop.f32.mrf.mxu0
      %137 = vmatprep.mubr.f32.mxu0 0.0
      %138 = vmatmul.mubr.f32.gmra.mxu0 %v66
      %v139 = vpop.f32.mrf.mxu0
      %v140 = vadd.f32 0.0, %v139
      %v141 = vpop.f32.mrf.mxu0
      %142 = vdwg.mxu0
      %v143 = vmul.f32 %v53, 0.9048374
      %v144 = vmul.f32 %v54, 0.9048374
      %v145 = vmul.f32 %v135, 0.095162585
      %v146 = vmul.f32 %v140, 0.095162585
      %v147 = vadd.f32 %v143, %v145
      %v148 = vadd.f32 %v144, %v146
      %v149 = vmax.f32 %v147, %v148
      %v150 = vrot.slane %v149, 4
      %v151 = vmax.f32 %v149, %v150
      %v152 = vrot.slane %v151, 2
      %v153 = vmax.f32 %v151, %v152
      %v154 = vrot.slane %v153, 1
      %v155 = vmax.f32 %v153, %v154
      %v156 = vsub.f32 %v147, %v155
      %v157 = vsub.f32 %v148, %v155
      %v158 = vmul.f32 %v156, 1.442695
      %v159 = vpow.pop %v158
      %v160 = vmul.f32 %v157, 1.442695
      %v161 = vpow.pop %v160
      %v162 = vadd.f32 %v159, %v161
      %v163 = vrot.slane %v162, 4
      %v164 = vadd.f32 %v162, %v163
      %v165 = vrot.slane %v164, 2
      %v166 = vadd.f32 %v164, %v165
      %v167 = vrot.slane %v166, 1
      %v168 = vadd.f32 %v166, %v167
      %v169 = vrcp.pop %v168
      %v170 = vmul.f32 %v159, %v169
      %v171 = vmul.f32 %v161, %v169
      %v172 = vadd.f32 %v55, %v170
      %v173 = vadd.f32 %v56, %v171
      %s174 = scalar_lea.vmem [#allocation3], 32
      %v175 = vld [vmem:[%s174] sm:$0xff]
      %v176 = vld [vmem:[%s174 + $0x8] sm:$0xff]
      %v177 = vld [vmem:[%s174 + $0x10] sm:$0xff]
      %v178 = vld [vmem:[%s174 + $0x18] sm:$0xff]
      %179 = vmatprep.subr.mxu0 0.0
      %180 = vmatpush1.msra.mxu0 0.0
      %181 = vmatprep.subr.mxu0 0.0
      %182 = vmatpush1.msra.mxu0 0.0
      %183 = vmatprep.subr.mxu0 0.0
      %184 = vmatpush1.msra.mxu0 0.0
      %185 = vmatprep.subr.mxu0 0.0
      %186 = vmatpush1.msra.mxu0 0.0
      %187 = vmatprep.subr.mxu0 0.0
      %188 = vmatpush1.msra.mxu0 0.0
      %189 = vmatprep.subr.mxu0 0.0
      %190 = vmatpush1.msra.mxu0 0.0
      %191 = vmatprep.subr.mxu0 0.0
      %192 = vmatpush1.msra.mxu0 0.0
      %193 = vmatprep.subr.mxu0 0.0
      %194 = vmatpush1.msra.mxu0 0.0
      %195 = vmatprep.subr.mxu0 0.0
      %196 = vmatpush1.msra.mxu0 0.0
      %197 = vmatprep.subr.mxu0 0.0
      %198 = vmatpush1.msra.mxu0 0.0
      %199 = vmatprep.subr.mxu0 0.0
      %200 = vmatpush1.msra.mxu0 0.0
      %201 = vmatprep.subr.mxu0 0.0
      %202 = vmatpush1.msra.mxu0 0.0
      %203 = vmatprep.subr.mxu0 0.0
      %204 = vmatpush1.msra.mxu0 %v178
      %205 = vmatprep.subr.mxu0 0.0
      %206 = vmatpush1.msra.mxu0 %v177
      %207 = vmatprep.subr.mxu0 0.0
      %208 = vmatpush1.msra.mxu0 %v176
      %209 = vmatprep.subr.mxu0 0.0
      %210 = vmatpush1.msra.mxu0 %v175
      %211 = vmatprep.subr.mxu0 0.0
      %212 = vmatpush2.msra.mxu0 0.0
      %213 = vmatprep.subr.mxu0 0.0
      %214 = vmatpush2.msra.mxu0 0.0
      %215 = vmatprep.subr.mxu0 0.0
      %216 = vmatpush2.msra.mxu0 0.0
      %217 = vmatprep.subr.mxu0 0.0
      %218 = vmatpush2.msra.mxu0 0.0
      %219 = vmatprep.subr.mxu0 0.0
      %220 = vmatpush2.msra.mxu0 0.0
      %221 = vmatprep.subr.mxu0 0.0
      %222 = vmatpush2.msra.mxu0 0.0
      %223 = vmatprep.subr.mxu0 0.0
      %224 = vmatpush2.msra.mxu0 0.0
      %225 = vmatprep.subr.mxu0 0.0
      %226 = vmatpush2.msra.mxu0 0.0
      %227 = vmatprep.subr.mxu0 0.0
      %228 = vmatpush2.msra.mxu0 0.0
      %229 = vmatprep.subr.mxu0 0.0
      %230 = vmatpush2.msra.mxu0 0.0
      %231 = vmatprep.subr.mxu0 0.0
      %232 = vmatpush2.msra.mxu0 0.0
      %233 = vmatprep.subr.mxu0 0.0
      %234 = vmatpush2.msra.mxu0 0.0
      %235 = vmatprep.subr.mxu0 0.0
      %236 = vmatpush2.msra.mxu0 0.0
      %237 = vmatprep.subr.mxu0 0.0
      %238 = vmatpush2.msra.mxu0 0.0
      %239 = vmatprep.subr.mxu0 0.0
      %240 = vmatpush2.msra.mxu0 0.0
      %241 = vmatprep.subr.mxu0 0.0
      %242 = vmatpush2.msra.mxu0 0.0
      %243 = vmatprep.mubr.f32.mxu0 0.0
      %244 = vmatmul.mubr.f32.gmra.mxu0 %v63
      %v245 = vpop.f32.mrf.mxu0
      %v246 = vadd.f32 0.0, %v245
      %v247 = vpop.f32.mrf.mxu0
      %248 = vmatprep.mubr.f32.mxu0 0.0
      %249 = vmatmul.mubr.f32.gmra.mxu0 %v66
      %v250 = vpop.f32.mrf.mxu0
      %v251 = vadd.f32 0.0, %v250
      %v252 = vpop.f32.mrf.mxu0
      %253 = vdwg.mxu0
      %v254 = vmul.f32 %v147, 0.9048374
      %v255 = vmul.f32 %v148, 0.9048374
      %v256 = vmul.f32 %v246, 0.095162585
      %v257 = vmul.f32 %v251, 0.095162585
      %v258 = vadd.f32 %v254, %v256
      %v259 = vadd.f32 %v255, %v257
      %v260 = vmax.f32 %v258, %v259
      %v261 = vrot.slane %v260, 4
      %v262 = vmax.f32 %v260, %v261
      %v263 = vrot.slane %v262, 2
      %v264 = vmax.f32 %v262, %v263
      %v265 = vrot.slane %v264, 1
      %v266 = vmax.f32 %v264, %v265
      %v267 = vsub.f32 %v258, %v266
      %v268 = vsub.f32 %v259, %v266
      %v269 = vmul.f32 %v267, 1.442695
      %v270 = vpow.pop %v269
      %v271 = vmul.f32 %v268, 1.442695
      %v272 = vpow.pop %v271
      %v273 = vadd.f32 %v270, %v272
      %v274 = vrot.slane %v273, 4
      %v275 = vadd.f32 %v273, %v274
      %v276 = vrot.slane %v275, 2
      %v277 = vadd.f32 %v275, %v276
      %v278 = vrot.slane %v277, 1
      %v279 = vadd.f32 %v277, %v278
      %v280 = vrcp.pop %v279
      %v281 = vmul.f32 %v270, %v280
      %v282 = vmul.f32 %v272, %v280
      %v283 = vadd.f32 %v172, %v281
      %v284 = vadd.f32 %v173, %v282
      %s285 = scalar_lea.vmem [#allocation3], 64
      %v286 = vld [vmem:[%s285] sm:$0xff]
      %v287 = vld [vmem:[%s285 + $0x8] sm:$0xff]
      %v288 = vld [vmem:[%s285 + $0x10] sm:$0xff]
      %v289 = vld [vmem:[%s285 + $0x18] sm:$0xff]
      %290 = vmatprep.subr.mxu0 0.0
      %291 = vmatpush1.msra.mxu0 0.0
      %292 = vmatprep.subr.mxu0 0.0
      %293 = vmatpush1.msra.mxu0 0.0
      %294 = vmatprep.subr.mxu0 0.0
      %295 = vmatpush1.msra.mxu0 0.0
      %296 = vmatprep.subr.mxu0 0.0
      %297 = vmatpush1.msra.mxu0 0.0
      %298 = vmatprep.subr.mxu0 0.0
      %299 = vmatpush1.msra.mxu0 0.0
      %300 = vmatprep.subr.mxu0 0.0
      %301 = vmatpush1.msra.mxu0 0.0
      %302 = vmatprep.subr.mxu0 0.0
      %303 = vmatpush1.msra.mxu0 0.0
      %304 = vmatprep.subr.mxu0 0.0
      %305 = vmatpush1.msra.mxu0 0.0
      %306 = vmatprep.subr.mxu0 0.0
      %307 = vmatpush1.msra.mxu0 0.0
      %308 = vmatprep.subr.mxu0 0.0
      %309 = vmatpush1.msra.mxu0 0.0
      %310 = vmatprep.subr.mxu0 0.0
      %311 = vmatpush1.msra.mxu0 0.0
      %312 = vmatprep.subr.mxu0 0.0
      %313 = vmatpush1.msra.mxu0 0.0
      %314 = vmatprep.subr.mxu0 0.0
      %315 = vmatpush1.msra.mxu0 %v289
      %316 = vmatprep.subr.mxu0 0.0
      %317 = vmatpush1.msra.mxu0 %v288
      %318 = vmatprep.subr.mxu0 0.0
      %319 = vmatpush1.msra.mxu0 %v287
      %320 = vmatprep.subr.mxu0 0.0
      %321 = vmatpush1.msra.mxu0 %v286
      %322 = vmatprep.subr.mxu0 0.0
      %323 = vmatpush2.msra.mxu0 0.0
      %324 = vmatprep.subr.mxu0 0.0
      %325 = vmatpush2.msra.mxu0 0.0
      %326 = vmatprep.subr.mxu0 0.0
      %327 = vmatpush2.msra.mxu0 0.0
      %328 = vmatprep.subr.mxu0 0.0
      %329 = vmatpush2.msra.mxu0 0.0
      %330 = vmatprep.subr.mxu0 0.0
      %331 = vmatpush2.msra.mxu0 0.0
      %332 = vmatprep.subr.mxu0 0.0
      %333 = vmatpush2.msra.mxu0 0.0
      %334 = vmatprep.subr.mxu0 0.0
      %335 = vmatpush2.msra.mxu0 0.0
      %336 = vmatprep.subr.mxu0 0.0
      %337 = vmatpush2.msra.mxu0 0.0
      %338 = vmatprep.subr.mxu0 0.0
      %339 = vmatpush2.msra.mxu0 0.0
      %340 = vmatprep.subr.mxu0 0.0
      %341 = vmatpush2.msra.mxu0 0.0
      %342 = vmatprep.subr.mxu0 0.0
      %343 = vmatpush2.msra.mxu0 0.0
      %344 = vmatprep.subr.mxu0 0.0
      %345 = vmatpush2.msra.mxu0 0.0
      %346 = vmatprep.subr.mxu0 0.0
      %347 = vmatpush2.msra.mxu0 0.0
      %348 = vmatprep.subr.mxu0 0.0
      %349 = vmatpush2.msra.mxu0 0.0
      %350 = vmatprep.subr.mxu0 0.0
      %351 = vmatpush2.msra.mxu0 0.0
      %352 = vmatprep.subr.mxu0 0.0
      %353 = vmatpush2.msra.mxu0 0.0
      %354 = vmatprep.mubr.f32.mxu0 0.0
      %355 = vmatmul.mubr.f32.gmra.mxu0 %v63
      %v356 = vpop.f32.mrf.mxu0
      %v357 = vadd.f32 0.0, %v356
      %v358 = vpop.f32.mrf.mxu0
      %359 = vmatprep.mubr.f32.mxu0 0.0
      %360 = vmatmul.mubr.f32.gmra.mxu0 %v66
      %v361 = vpop.f32.mrf.mxu0
      %v362 = vadd.f32 0.0, %v361
      %v363 = vpop.f32.mrf.mxu0
      %364 = vdwg.mxu0
      %v365 = vmul.f32 %v258, 0.9048374
      %v366 = vmul.f32 %v259, 0.9048374
      %v367 = vmul.f32 %v357, 0.095162585
      %v368 = vmul.f32 %v362, 0.095162585
      %v369 = vadd.f32 %v365, %v367
      %v370 = vadd.f32 %v366, %v368
      %v371 = vmax.f32 %v369, %v370
      %v372 = vrot.slane %v371, 4
      %v373 = vmax.f32 %v371, %v372
      %v374 = vrot.slane %v373, 2
      %v375 = vmax.f32 %v373, %v374
      %v376 = vrot.slane %v375, 1
      %v377 = vmax.f32 %v375, %v376
      %v378 = vsub.f32 %v369, %v377
      %v379 = vsub.f32 %v370, %v377
      %v380 = vmul.f32 %v378, 1.442695
      %v381 = vpow.pop %v380
      %v382 = vmul.f32 %v379, 1.442695
      %v383 = vpow.pop %v382
      %v384 = vadd.f32 %v381, %v383
      %v385 = vrot.slane %v384, 4
      %v386 = vadd.f32 %v384, %v385
      %v387 = vrot.slane %v386, 2
      %v388 = vadd.f32 %v386, %v387
      %v389 = vrot.slane %v388, 1
      %v390 = vadd.f32 %v388, %v389
      %v391 = vrcp.pop %v390
      %v392 = vmul.f32 %v381, %v391
      %v393 = vmul.f32 %v383, %v391
      %v394 = vadd.f32 %v283, %v392
      %v395 = vadd.f32 %v284, %v393
      %s396 = scalar_lea.vmem [#allocation3], 96
      %v397 = vld [vmem:[%s396] sm:$0xff]
      %v398 = vld [vmem:[%s396 + $0x8] sm:$0xff]
      %v399 = vld [vmem:[%s396 + $0x10] sm:$0xff]
      %v400 = vld [vmem:[%s396 + $0x18] sm:$0xff]
      %401 = vmatprep.subr.mxu0 0.0
      %402 = vmatpush1.msra.mxu0 0.0
      %403 = vmatprep.subr.mxu0 0.0
      %404 = vmatpush1.msra.mxu0 0.0
      %405 = vmatprep.subr.mxu0 0.0
      %406 = vmatpush1.msra.mxu0 0.0
      %407 = vmatprep.subr.mxu0 0.0
      %408 = vmatpush1.msra.mxu0 0.0
      %409 = vmatprep.subr.mxu0 0.0
      %410 = vmatpush1.msra.mxu0 0.0
      %411 = vmatprep.subr.mxu0 0.0
      %412 = vmatpush1.msra.mxu0 0.0
      %413 = vmatprep.subr.mxu0 0.0
      %414 = vmatpush1.msra.mxu0 0.0
      %415 = vmatprep.subr.mxu0 0.0
      %416 = vmatpush1.msra.mxu0 0.0
      %417 = vmatprep.subr.mxu0 0.0
      %418 = vmatpush1.msra.mxu0 0.0
      %419 = vmatprep.subr.mxu0 0.0
      %420 = vmatpush1.msra.mxu0 0.0
      %421 = vmatprep.subr.mxu0 0.0
      %422 = vmatpush1.msra.mxu0 0.0
      %423 = vmatprep.subr.mxu0 0.0
      %424 = vmatpush1.msra.mxu0 0.0
      %425 = vmatprep.subr.mxu0 0.0
      %426 = vmatpush1.msra.mxu0 %v400
      %427 = vmatprep.subr.mxu0 0.0
      %428 = vmatpush1.msra.mxu0 %v399
      %429 = vmatprep.subr.mxu0 0.0
      %430 = vmatpush1.msra.mxu0 %v398
      %431 = vmatprep.subr.mxu0 0.0
      %432 = vmatpush1.msra.mxu0 %v397
      %433 = vmatprep.subr.mxu0 0.0
      %434 = vmatpush2.msra.mxu0 0.0
      %435 = vmatprep.subr.mxu0 0.0
      %436 = vmatpush2.msra.mxu0 0.0
      %437 = vmatprep.subr.mxu0 0.0
      %438 = vmatpush2.msra.mxu0 0.0
      %439 = vmatprep.subr.mxu0 0.0
      %440 = vmatpush2.msra.mxu0 0.0
      %441 = vmatprep.subr.mxu0 0.0
      %442 = vmatpush2.msra.mxu0 0.0
      %443 = vmatprep.subr.mxu0 0.0
      %444 = vmatpush2.msra.mxu0 0.0
      %445 = vmatprep.subr.mxu0 0.0
      %446 = vmatpush2.msra.mxu0 0.0
      %447 = vmatprep.subr.mxu0 0.0
      %448 = vmatpush2.msra.mxu0 0.0
      %449 = vmatprep.subr.mxu0 0.0
      %450 = vmatpush2.msra.mxu0 0.0
      %451 = vmatprep.subr.mxu0 0.0
      %452 = vmatpush2.msra.mxu0 0.0
      %453 = vmatprep.subr.mxu0 0.0
      %454 = vmatpush2.msra.mxu0 0.0
      %455 = vmatprep.subr.mxu0 0.0
      %456 = vmatpush2.msra.mxu0 0.0
      %457 = vmatprep.subr.mxu0 0.0
      %458 = vmatpush2.msra.mxu0 0.0
      %459 = vmatprep.subr.mxu0 0.0
      %460 = vmatpush2.msra.mxu0 0.0
      %461 = vmatprep.subr.mxu0 0.0
      %462 = vmatpush2.msra.mxu0 0.0
      %463 = vmatprep.subr.mxu0 0.0
      %464 = vmatpush2.msra.mxu0 0.0
      %465 = vmatprep.mubr.f32.mxu0 0.0
      %466 = vmatmul.mubr.f32.gmra.mxu0 %v63
      %v467 = vpop.f32.mrf.mxu0
      %v468 = vadd.f32 0.0, %v467
      %v469 = vpop.f32.mrf.mxu0
      %470 = vmatprep.mubr.f32.mxu0 0.0
      %471 = vmatmul.mubr.f32.gmra.mxu0 %v66
      %v472 = vpop.f32.mrf.mxu0
      %v473 = vadd.f32 0.0, %v472
      %v474 = vpop.f32.mrf.mxu0
      %475 = vdwg.mxu0
      %v476 = vmul.f32 %v369, 0.9048374
      %v477 = vmul.f32 %v370, 0.9048374
      %v478 = vmul.f32 %v468, 0.095162585
      %v479 = vmul.f32 %v473, 0.095162585
      %v480 = vadd.f32 %v476, %v478
      %v481 = vadd.f32 %v477, %v479
      %v482 = vmax.f32 %v480, %v481
      %v483 = vrot.slane %v482, 4
      %v484 = vmax.f32 %v482, %v483
      %v485 = vrot.slane %v484, 2
      %v486 = vmax.f32 %v484, %v485
      %v487 = vrot.slane %v486, 1
      %v488 = vmax.f32 %v486, %v487
      %v489 = vsub.f32 %v480, %v488
      %v490 = vsub.f32 %v481, %v488
      %v491 = vmul.f32 %v489, 1.442695
      %v492 = vpow.pop %v491
      %v493 = vmul.f32 %v490, 1.442695
      %v494 = vpow.pop %v493
      %v495 = vadd.f32 %v492, %v494
      %v496 = vrot.slane %v495, 4
      %v497 = vadd.f32 %v495, %v496
      %v498 = vrot.slane %v497, 2
      %v499 = vadd.f32 %v497, %v498
      %v500 = vrot.slane %v499, 1
      %v501 = vadd.f32 %v499, %v500
      %v502 = vrcp.pop %v501
      %v503 = vmul.f32 %v492, %v502
      %v504 = vmul.f32 %v494, %v502
      %v505 = vadd.f32 %v394, %v503
      %v506 = vadd.f32 %v395, %v504
      %s507 = scalar_lea.vmem [#allocation3], 128
      %v508 = vld [vmem:[%s507] sm:$0xff]
      %v509 = vld [vmem:[%s507 + $0x8] sm:$0xff]
      %v510 = vld [vmem:[%s507 + $0x10] sm:$0xff]
      %v511 = vld [vmem:[%s507 + $0x18] sm:$0xff]
      %512 = vmatprep.subr.mxu0 0.0
      %513 = vmatpush1.msra.mxu0 0.0
      %514 = vmatprep.subr.mxu0 0.0
      %515 = vmatpush1.msra.mxu0 0.0
      %516 = vmatprep.subr.mxu0 0.0
      %517 = vmatpush1.msra.mxu0 0.0
      %518 = vmatprep.subr.mxu0 0.0
      %519 = vmatpush1.msra.mxu0 0.0
      %520 = vmatprep.subr.mxu0 0.0
      %521 = vmatpush1.msra.mxu0 0.0
      %522 = vmatprep.subr.mxu0 0.0
      %523 = vmatpush1.msra.mxu0 0.0
      %524 = vmatprep.subr.mxu0 0.0
      %525 = vmatpush1.msra.mxu0 0.0
      %526 = vmatprep.subr.mxu0 0.0
      %527 = vmatpush1.msra.mxu0 0.0
      %528 = vmatprep.subr.mxu0 0.0
      %529 = vmatpush1.msra.mxu0 0.0
      %530 = vmatprep.subr.mxu0 0.0
      %531 = vmatpush1.msra.mxu0 0.0
      %532 = vmatprep.subr.mxu0 0.0
      %533 = vmatpush1.msra.mxu0 0.0
      %534 = vmatprep.subr.mxu0 0.0
      %535 = vmatpush1.msra.mxu0 0.0
      %536 = vmatprep.subr.mxu0 0.0
      %537 = vmatpush1.msra.mxu0 %v511
      %538 = vmatprep.subr.mxu0 0.0
      %539 = vmatpush1.msra.mxu0 %v510
      %540 = vmatprep.subr.mxu0 0.0
      %541 = vmatpush1.msra.mxu0 %v509
      %542 = vmatprep.subr.mxu0 0.0
      %543 = vmatpush1.msra.mxu0 %v508
      %544 = vmatprep.subr.mxu0 0.0
      %545 = vmatpush2.msra.mxu0 0.0
      %546 = vmatprep.subr.mxu0 0.0
      %547 = vmatpush2.msra.mxu0 0.0
      %548 = vmatprep.subr.mxu0 0.0
      %549 = vmatpush2.msra.mxu0 0.0
      %550 = vmatprep.subr.mxu0 0.0
      %551 = vmatpush2.msra.mxu0 0.0
      %552 = vmatprep.subr.mxu0 0.0
      %553 = vmatpush2.msra.mxu0 0.0
      %554 = vmatprep.subr.mxu0 0.0
      %555 = vmatpush2.msra.mxu0 0.0
      %556 = vmatprep.subr.mxu0 0.0
      %557 = vmatpush2.msra.mxu0 0.0
      %558 = vmatprep.subr.mxu0 0.0
      %559 = vmatpush2.msra.mxu0 0.0
      %560 = vmatprep.subr.mxu0 0.0
      %561 = vmatpush2.msra.mxu0 0.0
      %562 = vmatprep.subr.mxu0 0.0
      %563 = vmatpush2.msra.mxu0 0.0
      %564 = vmatprep.subr.mxu0 0.0
      %565 = vmatpush2.msra.mxu0 0.0
      %566 = vmatprep.subr.mxu0 0.0
      %567 = vmatpush2.msra.mxu0 0.0
      %568 = vmatprep.subr.mxu0 0.0
      %569 = vmatpush2.msra.mxu0 0.0
      %570 = vmatprep.subr.mxu0 0.0
      %571 = vmatpush2.msra.mxu0 0.0
      %572 = vmatprep.subr.mxu0 0.0
      %573 = vmatpush2.msra.mxu0 0.0
      %574 = vmatprep.subr.mxu0 0.0
      %575 = vmatpush2.msra.mxu0 0.0
      %576 = vmatprep.mubr.f32.mxu0 0.0
      %577 = vmatmul.mubr.f32.gmra.mxu0 %v63
      %v578 = vpop.f32.mrf.mxu0
      %v579 = vadd.f32 0.0, %v578
      %v580 = vpop.f32.mrf.mxu0
      %581 = vmatprep.mubr.f32.mxu0 0.0
      %582 = vmatmul.mubr.f32.gmra.mxu0 %v66
      %v583 = vpop.f32.mrf.mxu0
      %v584 = vadd.f32 0.0, %v583
      %v585 = vpop.f32.mrf.mxu0
      %586 = vdwg.mxu0
      %v587 = vmul.f32 %v480, 0.9048374
      %v588 = vmul.f32 %v481, 0.9048374
      %v589 = vmul.f32 %v579, 0.095162585
      %v590 = vmul.f32 %v584, 0.095162585
      %v591 = vadd.f32 %v587, %v589
      %v592 = vadd.f32 %v588, %v590
      %v593 = vmax.f32 %v591, %v592
      %v594 = vrot.slane %v593, 4
      %v595 = vmax.f32 %v593, %v594
      %v596 = vrot.slane %v595, 2
      %v597 = vmax.f32 %v595, %v596
      %v598 = vrot.slane %v597, 1
      %v599 = vmax.f32 %v597, %v598
      %v600 = vsub.f32 %v591, %v599
      %v601 = vsub.f32 %v592, %v599
      %v602 = vmul.f32 %v600, 1.442695
      %v603 = vpow.pop %v602
      %v604 = vmul.f32 %v601, 1.442695
      %v605 = vpow.pop %v604
      %v606 = vadd.f32 %v603, %v605
      %v607 = vrot.slane %v606, 4
      %v608 = vadd.f32 %v606, %v607
      %v609 = vrot.slane %v608, 2
      %v610 = vadd.f32 %v608, %v609
      %v611 = vrot.slane %v610, 1
      %v612 = vadd.f32 %v610, %v611
      %v613 = vrcp.pop %v612
      %v614 = vmul.f32 %v603, %v613
      %v615 = vmul.f32 %v605, %v613
      %v616 = vadd.f32 %v505, %v614
      %v617 = vadd.f32 %v506, %v615
      %s618 = scalar_lea.vmem [#allocation3], 160
      %v619 = vld [vmem:[%s618] sm:$0xff]
      %v620 = vld [vmem:[%s618 + $0x8] sm:$0xff]
      %v621 = vld [vmem:[%s618 + $0x10] sm:$0xff]
      %v622 = vld [vmem:[%s618 + $0x18] sm:$0xff]
      %623 = vmatprep.subr.mxu0 0.0
      %624 = vmatpush1.msra.mxu0 0.0
      %625 = vmatprep.subr.mxu0 0.0
      %626 = vmatpush1.msra.mxu0 0.0
      %627 = vmatprep.subr.mxu0 0.0
      %628 = vmatpush1.msra.mxu0 0.0
      %629 = vmatprep.subr.mxu0 0.0
      %630 = vmatpush1.msra.mxu0 0.0
      %631 = vmatprep.subr.mxu0 0.0
      %632 = vmatpush1.msra.mxu0 0.0
      %633 = vmatprep.subr.mxu0 0.0
      %634 = vmatpush1.msra.mxu0 0.0
      %635 = vmatprep.subr.mxu0 0.0
      %636 = vmatpush1.msra.mxu0 0.0
      %637 = vmatprep.subr.mxu0 0.0
      %638 = vmatpush1.msra.mxu0 0.0
      %639 = vmatprep.subr.mxu0 0.0
      %640 = vmatpush1.msra.mxu0 0.0
      %641 = vmatprep.subr.mxu0 0.0
      %642 = vmatpush1.msra.mxu0 0.0
      %643 = vmatprep.subr.mxu0 0.0
      %644 = vmatpush1.msra.mxu0 0.0
      %645 = vmatprep.subr.mxu0 0.0
      %646 = vmatpush1.msra.mxu0 0.0
      %647 = vmatprep.subr.mxu0 0.0
      %648 = vmatpush1.msra.mxu0 %v622
      %649 = vmatprep.subr.mxu0 0.0
      %650 = vmatpush1.msra.mxu0 %v621
      %651 = vmatprep.subr.mxu0 0.0
      %652 = vmatpush1.msra.mxu0 %v620
      %653 = vmatprep.subr.mxu0 0.0
      %654 = vmatpush1.msra.mxu0 %v619
      %655 = vmatprep.subr.mxu0 0.0
      %656 = vmatpush2.msra.mxu0 0.0
      %657 = vmatprep.subr.mxu0 0.0
      %658 = vmatpush2.msra.mxu0 0.0
      %659 = vmatprep.subr.mxu0 0.0
      %660 = vmatpush2.msra.mxu0 0.0
      %661 = vmatprep.subr.mxu0 0.0
      %662 = vmatpush2.msra.mxu0 0.0
      %663 = vmatprep.subr.mxu0 0.0
      %664 = vmatpush2.msra.mxu0 0.0
      %665 = vmatprep.subr.mxu0 0.0
      %666 = vmatpush2.msra.mxu0 0.0
      %667 = vmatprep.subr.mxu0 0.0
      %668 = vmatpush2.msra.mxu0 0.0
      %669 = vmatprep.subr.mxu0 0.0
      %670 = vmatpush2.msra.mxu0 0.0
      %671 = vmatprep.subr.mxu0 0.0
      %672 = vmatpush2.msra.mxu0 0.0
      %673 = vmatprep.subr.mxu0 0.0
      %674 = vmatpush2.msra.mxu0 0.0
      %675 = vmatprep.subr.mxu0 0.0
      %676 = vmatpush2.msra.mxu0 0.0
      %677 = vmatprep.subr.mxu0 0.0
      %678 = vmatpush2.msra.mxu0 0.0
      %679 = vmatprep.subr.mxu0 0.0
      %680 = vmatpush2.msra.mxu0 0.0
      %681 = vmatprep.subr.mxu0 0.0
      %682 = vmatpush2.msra.mxu0 0.0
      %683 = vmatprep.subr.mxu0 0.0
      %684 = vmatpush2.msra.mxu0 0.0
      %685 = vmatprep.subr.mxu0 0.0
      %686 = vmatpush2.msra.mxu0 0.0
      %687 = vmatprep.mubr.f32.mxu0 0.0
      %688 = vmatmul.mubr.f32.gmra.mxu0 %v63
      %v689 = vpop.f32.mrf.mxu0
      %v690 = vadd.f32 0.0, %v689
      %v691 = vpop.f32.mrf.mxu0
      %692 = vmatprep.mubr.f32.mxu0 0.0
      %693 = vmatmul.mubr.f32.gmra.mxu0 %v66
      %v694 = vpop.f32.mrf.mxu0
      %v695 = vadd.f32 0.0, %v694
      %v696 = vpop.f32.mrf.mxu0
      %697 = vdwg.mxu0
      %v698 = vmul.f32 %v591, 0.9048374
      %v699 = vmul.f32 %v592, 0.9048374
      %v700 = vmul.f32 %v690, 0.095162585
      %v701 = vmul.f32 %v695, 0.095162585
      %v702 = vadd.f32 %v698, %v700
      %v703 = vadd.f32 %v699, %v701
      %v704 = vmax.f32 %v702, %v703
      %v705 = vrot.slane %v704, 4
      %v706 = vmax.f32 %v704, %v705
      %v707 = vrot.slane %v706, 2
      %v708 = vmax.f32 %v706, %v707
      %v709 = vrot.slane %v708, 1
      %v710 = vmax.f32 %v708, %v709
      %v711 = vsub.f32 %v702, %v710
      %v712 = vsub.f32 %v703, %v710
      %v713 = vmul.f32 %v711, 1.442695
      %v714 = vpow.pop %v713
      %v715 = vmul.f32 %v712, 1.442695
      %v716 = vpow.pop %v715
      %v717 = vadd.f32 %v714, %v716
      %v718 = vrot.slane %v717, 4
      %v719 = vadd.f32 %v717, %v718
      %v720 = vrot.slane %v719, 2
      %v721 = vadd.f32 %v719, %v720
      %v722 = vrot.slane %v721, 1
      %v723 = vadd.f32 %v721, %v722
      %v724 = vrcp.pop %v723
      %v725 = vmul.f32 %v714, %v724
      %v726 = vmul.f32 %v716, %v724
      %v727 = vadd.f32 %v616, %v725
      %v728 = vadd.f32 %v617, %v726
      %s729 = scalar_lea.vmem [#allocation3], 192
      %v730 = vld [vmem:[%s729] sm:$0xff]
      %v731 = vld [vmem:[%s729 + $0x8] sm:$0xff]
      %v732 = vld [vmem:[%s729 + $0x10] sm:$0xff]
      %v733 = vld [vmem:[%s729 + $0x18] sm:$0xff]
      %734 = vmatprep.subr.mxu0 0.0
      %735 = vmatpush1.msra.mxu0 0.0
      %736 = vmatprep.subr.mxu0 0.0
      %737 = vmatpush1.msra.mxu0 0.0
      %738 = vmatprep.subr.mxu0 0.0
      %739 = vmatpush1.msra.mxu0 0.0
      %740 = vmatprep.subr.mxu0 0.0
      %741 = vmatpush1.msra.mxu0 0.0
      %742 = vmatprep.subr.mxu0 0.0
      %743 = vmatpush1.msra.mxu0 0.0
      %744 = vmatprep.subr.mxu0 0.0
      %745 = vmatpush1.msra.mxu0 0.0
      %746 = vmatprep.subr.mxu0 0.0
      %747 = vmatpush1.msra.mxu0 0.0
      %748 = vmatprep.subr.mxu0 0.0
      %749 = vmatpush1.msra.mxu0 0.0
      %750 = vmatprep.subr.mxu0 0.0
      %751 = vmatpush1.msra.mxu0 0.0
      %752 = vmatprep.subr.mxu0 0.0
      %753 = vmatpush1.msra.mxu0 0.0
      %754 = vmatprep.subr.mxu0 0.0
      %755 = vmatpush1.msra.mxu0 0.0
      %756 = vmatprep.subr.mxu0 0.0
      %757 = vmatpush1.msra.mxu0 0.0
      %758 = vmatprep.subr.mxu0 0.0
      %759 = vmatpush1.msra.mxu0 %v733
      %760 = vmatprep.subr.mxu0 0.0
      %761 = vmatpush1.msra.mxu0 %v732
      %762 = vmatprep.subr.mxu0 0.0
      %763 = vmatpush1.msra.mxu0 %v731
      %764 = vmatprep.subr.mxu0 0.0
      %765 = vmatpush1.msra.mxu0 %v730
      %766 = vmatprep.subr.mxu0 0.0
      %767 = vmatpush2.msra.mxu0 0.0
      %768 = vmatprep.subr.mxu0 0.0
      %769 = vmatpush2.msra.mxu0 0.0
      %770 = vmatprep.subr.mxu0 0.0
      %771 = vmatpush2.msra.mxu0 0.0
      %772 = vmatprep.subr.mxu0 0.0
      %773 = vmatpush2.msra.mxu0 0.0
      %774 = vmatprep.subr.mxu0 0.0
      %775 = vmatpush2.msra.mxu0 0.0
      %776 = vmatprep.subr.mxu0 0.0
      %777 = vmatpush2.msra.mxu0 0.0
      %778 = vmatprep.subr.mxu0 0.0
      %779 = vmatpush2.msra.mxu0 0.0
      %780 = vmatprep.subr.mxu0 0.0
      %781 = vmatpush2.msra.mxu0 0.0
      %782 = vmatprep.subr.mxu0 0.0
      %783 = vmatpush2.msra.mxu0 0.0
      %784 = vmatprep.subr.mxu0 0.0
      %785 = vmatpush2.msra.mxu0 0.0
      %786 = vmatprep.subr.mxu0 0.0
      %787 = vmatpush2.msra.mxu0 0.0
      %788 = vmatprep.subr.mxu0 0.0
      %789 = vmatpush2.msra.mxu0 0.0
      %790 = vmatprep.subr.mxu0 0.0
      %791 = vmatpush2.msra.mxu0 0.0
      %792 = vmatprep.subr.mxu0 0.0
      %793 = vmatpush2.msra.mxu0 0.0
      %794 = vmatprep.subr.mxu0 0.0
      %795 = vmatpush2.msra.mxu0 0.0
      %796 = vmatprep.subr.mxu0 0.0
      %797 = vmatpush2.msra.mxu0 0.0
      %798 = vmatprep.mubr.f32.mxu0 0.0
      %799 = vmatmul.mubr.f32.gmra.mxu0 %v63
      %v800 = vpop.f32.mrf.mxu0
      %v801 = vadd.f32 0.0, %v800
      %v802 = vpop.f32.mrf.mxu0
      %803 = vmatprep.mubr.f32.mxu0 0.0
      %804 = vmatmul.mubr.f32.gmra.mxu0 %v66
      %v805 = vpop.f32.mrf.mxu0
      %v806 = vadd.f32 0.0, %v805
      %v807 = vpop.f32.mrf.mxu0
      %808 = vdwg.mxu0
      %v809 = vmul.f32 %v702, 0.9048374
      %v810 = vmul.f32 %v703, 0.9048374
      %v811 = vmul.f32 %v801, 0.095162585
      %v812 = vmul.f32 %v806, 0.095162585
      %v813 = vadd.f32 %v809, %v811
      %v814 = vadd.f32 %v810, %v812
      %v815 = vmax.f32 %v813, %v814
      %v816 = vrot.slane %v815, 4
      %v817 = vmax.f32 %v815, %v816
      %v818 = vrot.slane %v817, 2
      %v819 = vmax.f32 %v817, %v818
      %v820 = vrot.slane %v819, 1
      %v821 = vmax.f32 %v819, %v820
      %v822 = vsub.f32 %v813, %v821
      %v823 = vsub.f32 %v814, %v821
      %v824 = vmul.f32 %v822, 1.442695
      %v825 = vpow.pop %v824
      %v826 = vmul.f32 %v823, 1.442695
      %v827 = vpow.pop %v826
      %v828 = vadd.f32 %v825, %v827
      %v829 = vrot.slane %v828, 4
      %v830 = vadd.f32 %v828, %v829
      %v831 = vrot.slane %v830, 2
      %v832 = vadd.f32 %v830, %v831
      %v833 = vrot.slane %v832, 1
      %v834 = vadd.f32 %v832, %v833
      %v835 = vrcp.pop %v834
      %v836 = vmul.f32 %v825, %v835
      %v837 = vmul.f32 %v827, %v835
      %v838 = vadd.f32 %v727, %v836
      %v839 = vadd.f32 %v728, %v837
      %840 = vst [vmem:[#allocation2] sm:$0xff] %v813
      %841 = vst [vmem:[#allocation2 + $0x8] sm:$0xff] %v814
      %842 = vst [vmem:[#allocation8] sm:$0xff] %v838
      %843 = vst [vmem:[#allocation8 + $0x8] sm:$0xff] %v839
    $region25: #{tpu_custom_call.1} parent=1 // pred_fallthru
      _
    // Predicated region
    $region26: #{tpu_custom_call.1} parent=1 // pred_check
      _
    $region27: #{tpu_custom_call.1} parent=1 // pred_check_branch
      %845 = sbr.rel (0) target = $region29
    $region28: #{tpu_custom_call.1} parent=1 // pred_region
      %s847 = ssub.s32 256, 256
      %848 = vsyncadd [#allocation5], %s847
      %s849 = sshll.u32 [#allocation8], 4
      %s850 = int_to_ptr.vmem [resolvable:$true] %s849
      %855 = dma.vmem_to_hbm [thread:$0]  %s850, 256, %s2, [#allocation5], 128, 128, 8
    $region29: #{tpu_custom_call.1} parent=1 // pred_fallthru
      _
    // Predicated region
    $region30: #{tpu_custom_call.1} parent=1 // pred_check
      _
    $region31: #{tpu_custom_call.1} parent=1 // pred_check_branch
      %857 = sbr.rel (0) target = $region33
    $region32: #{tpu_custom_call.1} parent=1 // pred_region
      %858 = dma.done [#allocation5], 256
    $region33: #{tpu_custom_call.1} parent=1 // pred_fallthru
      _
    %859 = vsyncpa [#allocation4], 1
    %860 = vsyncpa [#allocation7], 1
    %861 = vsyncpa [#allocation5], 1

</llo_original>
